<compile_context>
chip_gen: v5e
topology: v5e:2x2
jax: 0.10.0
libtpu: 0.0.40
codegen_flags: <defaults>
</compile_context>

<pallas_src>
import functools

import jax
import jax.numpy as jnp
from jax import lax
from jax.experimental import pallas as pl
from jax.experimental.pallas import tpu as pltpu

LANES = 128
MAX_TILE_ROWS = 4096            # (4096, 128) f32 = 2 MiB per input per buffer
VMEM_LIMIT_BYTES = 32 * 1024 * 1024


def _round_up(a, b):
    return (a + b - 1) // b * b


def _sublane_multiple(dtype):
    """Sublane alignment for a dtype: f32 -> 8, bf16 -> 16, int8/fp8 -> 32."""
    bits = jnp.dtype(dtype).itemsize * 8
    return max(8, 256 // bits)


def _num_megacore_tcs():
    """TensorCores usable via a 'parallel' grid axis on the current chip."""
    try:
        kind = jax.devices()[0].device_kind.lower()
    except Exception:
        return 1
    # v7x has 2 TCs/chip; v4 / v5p expose 2 cores via megacore. v5e/v6e: 1 TC.
    if any(tag in kind for tag in ("v7", "v4", "v5p")):
        return 2
    return 1


def _dice_sums_kernel(x_ref, t_ref, out_ref, *, n_valid, tile_rows,
                      blocks_per_core, needs_mask, apply_sigmoid):
    """Per-core partial sums of (p*t) and (p+t) into a (1, 2, 8, 128) block."""
    c = pl.program_id(0)        # core / outer (parallel) axis
    i = pl.program_id(1)        # streaming (arbitrary) axis

    @pl.when(i == 0)
    def _init():
        out_ref[...] = jnp.zeros_like(out_ref)

    x = x_ref[...].astype(jnp.float32)
    t = t_ref[...].astype(jnp.float32)
    if apply_sigmoid:
        # sigmoid(x) == 0.5*tanh(0.5*x) + 0.5 : 1 EUP op/element instead of
        # exp + reciprocal, keeping the kernel HBM-bound on v7x.
        p = 0.5 * jnp.tanh(0.5 * x) + 0.5
    else:
        p = x
    tp = p * t
    pt = p + t

    def _accumulate(tp_v, pt_v):
        # vreg-sized accumulation: fold (tile_rows,128) -> (8,128) with pure
        # VALU vreg adds; no full-tile VMEM accumulator read-modify-write.
        out_ref[0, 0, :, :] += tp_v.reshape(-1, 8, LANES).sum(axis=0)
        out_ref[0, 1, :, :] += pt_v.reshape(-1, 8, LANES).sum(axis=0)

    if needs_mask:
        # Global element offset of this block (int32 arithmetic).
        g = c * blocks_per_core + i
        base = g * (tile_rows * LANES)
        block_end = base + tile_rows * LANES

        @pl.when(block_end <= n_valid)
        def _full():
            _accumulate(tp, pt)

        @pl.when(block_end > n_valid)
        def _partial():
            # Keep the select (jnp.where): out-of-range lanes may hold
            # uninitialized VMEM whose tanh/product is NaN; multiply-by-mask
            # (0 * NaN) would poison the sum.
            row = lax.broadcasted_iota(jnp.int32, (tile_rows, LANES), 0)
            lane = lax.broadcasted_iota(jnp.int32, (tile_rows, LANES), 1)
            valid = (base + row * LANES + lane) < n_valid
            _accumulate(jnp.where(valid, tp, 0.0), jnp.where(valid, pt, 0.0))
    else:
        _accumulate(tp, pt)


@functools.partial(
    jax.jit,
    static_argnames=("eps", "activation", "max_tile_rows", "num_cores"))
def dice_loss(y_pr, y_gt, eps=1e-7, activation="sigmoid",
              max_tile_rows=MAX_TILE_ROWS, num_cores=None):
    """Pallas equivalent of DiceLoss(eps, activation).forward(y_pr, y_gt)."""
    if activation in (None, "none"):
        apply_sigmoid = False
    elif activation == "sigmoid":
        apply_sigmoid = True
    else:
        # TODO(synk): 'softmax2d' activation of f_score not implemented in the kernel.
        raise NotImplementedError("Activation implemented for sigmoid and none")

    x = y_pr.reshape(-1)
    t = y_gt.reshape(-1)
    n = x.shape[0]

    n_lane = _round_up(n, LANES)
    if n_lane != n:
        # Atypical path (numel % 128 != 0): small wrapper pad copy; the padded
        # elements are masked out in-kernel (n_valid = original n).
        x = jnp.pad(x, (0, n_lane - n))
        t = jnp.pad(t, (0, n_lane - n))
    rows = n_lane // LANES
    x2 = x.reshape(rows, LANES)
    t2 = t.reshape(rows, LANES)

    # Tile rows: as large as allowed, aligned to the sublane packing of the
    # narrowest input dtype (f32 -> 8, bf16 -> 16, int8 -> 32).
    row_align = max(_sublane_multiple(x2.dtype), _sublane_multiple(t2.dtype))
    tile_rows = min(max_tile_rows, _round_up(rows, row_align))
    tile_rows = _round_up(tile_rows, row_align)
    num_row_blocks = pl.cdiv(rows, tile_rows)

    # 2-TensorCore split only on chips that have 2 TCs and enough blocks.
    ncores = num_cores if num_cores is not None else _num_megacore_tcs()
    ncores = max(1, min(2, int(ncores)))
    if num_row_blocks < 2:
        ncores = 1
    blocks_per_core = pl.cdiv(num_row_blocks, ncores)

    covered = ncores * blocks_per_core * tile_rows * LANES
    needs_mask = covered != n
    # If the grid has one more block than the data (odd block count split over
    # 2 cores), clamp the extra block onto the last real block; the in-kernel
    # offset mask then zeroes its contribution.
    needs_clamp = ncores * blocks_per_core > num_row_blocks

    if needs_clamp:
        last_block = num_row_blocks - 1

        def in_index_map(c, i):
            return (jnp.minimum(c * blocks_per_core + i, last_block), 0)
    else:

        def in_index_map(c, i):
            return (c * blocks_per_core + i, 0)

    kernel = functools.partial(
        _dice_sums_kernel,
        n_valid=n,
        tile_rows=tile_rows,
        blocks_per_core=blocks_per_core,
        needs_mask=needs_mask,
        apply_sigmoid=apply_sigmoid,
    )

    partial_sums = pl.pallas_call(
        kernel,
        out_shape=jax.ShapeDtypeStruct((ncores, 2, 8, LANES), jnp.float32),
        grid_spec=pltpu.PrefetchScalarGridSpec(
            num_scalar_prefetch=0,
            grid=(ncores, blocks_per_core),
            in_specs=[
                pl.BlockSpec((tile_rows, LANES), in_index_map),
                pl.BlockSpec((tile_rows, LANES), in_index_map),
            ],
            out_specs=pl.BlockSpec((1, 2, 8, LANES), lambda c, i: (c, 0, 0, 0)),
        ),
        compiler_params=pltpu.CompilerParams(
            dimension_semantics=("parallel", "arbitrary"),
            vmem_limit_bytes=VMEM_LIMIT_BYTES,
        ),
    )(x2, t2)

    # Tiny wrapper-side reduction of the per-core vreg partials:
    # sums[0] = sum(p*gt), sums[1] = sum(p) + sum(gt).
    sums = jnp.sum(partial_sums, axis=(0, 2, 3))
    tp = sums[0]
    p_plus_t = sums[1]
    score = (2.0 * tp + eps) / (p_plus_t + eps)
    return 1.0 - score


def _dice_loss_ref(y_pr, y_gt, eps=1e-7):
    """Pure-JAX reference mirroring f_score(beta=1, activation='sigmoid')."""
    p = jax.nn.sigmoid(y_pr.astype(jnp.float32)).reshape(-1)
    t = y_gt.astype(jnp.float32).reshape(-1)
    tp = jnp.sum(t * p)
    fp = jnp.sum(p) - tp
    fn = jnp.sum(t) - tp
    score = (2.0 * tp + eps) / (2.0 * tp + fn + fp + eps)
    return 1.0 - score


if __name__ == "__main__":
    key = jax.random.PRNGKey(0)
    k1, k2, k3, k4 = jax.random.split(key, 4)

    # Test 1: canonical small NCHW shape (f32 logits, f32 {0,1} mask),
    # unmasked fast path, single block.
    B, C, H, W = 2, 4, 16, 16
    y_pr = jax.random.normal(k1, (B, C, H, W), dtype=jnp.float32)
    y_gt = (jax.random.uniform(k2, (B, C, H, W)) > 0.5).astype(jnp.float32)
    loss = jax.block_until_ready(dice_loss(y_pr, y_gt, eps=1e-7))
    ref = _dice_loss_ref(y_pr, y_gt, eps=1e-7)
    assert jnp.allclose(loss, ref, rtol=1e-5, atol=1e-5), (loss, ref)

    # Test 2: ragged size (numel % 128 != 0) + forced 2-core split with small
    # tiles -> exercises lane padding, the masked partial block, per-core sums.
    y_pr2 = jax.random.normal(k3, (1, 3, 17, 31), dtype=jnp.float32)
    y_gt2 = (jax.random.uniform(k4, (1, 3, 17, 31)) > 0.5).astype(jnp.float32)
    loss2 = jax.block_until_ready(
        dice_loss(y_pr2, y_gt2, max_tile_rows=8, num_cores=2))
    ref2 = _dice_loss_ref(y_pr2, y_gt2)
    assert jnp.allclose(loss2, ref2, rtol=1e-5, atol=1e-5), (loss2, ref2)

    # Test 3: odd block count split over 2 cores -> exercises the clamped
    # (duplicated, fully-masked) tail block path.
    y_pr3 = jax.random.normal(k1, (2, 4, 12, 32), dtype=jnp.float32)
    y_gt3 = (jax.random.uniform(k2, (2, 4, 12, 32)) > 0.5).astype(jnp.float32)
    loss3 = jax.block_until_ready(
        dice_loss(y_pr3, y_gt3, max_tile_rows=8, num_cores=2))
    ref3 = _dice_loss_ref(y_pr3, y_gt3)
    assert jnp.allclose(loss3, ref3, rtol=1e-5, atol=1e-5), (loss3, ref3)

    # Test 4: narrow dtypes end-to-end (bf16 logits + bf16 {0,1} mask), no
    # wrapper-side astype; in-kernel f32 accumulation.
    y_pr4 = jax.random.normal(k3, (B, C, H, W), dtype=jnp.bfloat16)
    y_gt4 = (jax.random.uniform(k4, (B, C, H, W)) > 0.5).astype(jnp.bfloat16)
    loss4 = jax.block_until_ready(dice_loss(y_pr4, y_gt4))
    ref4 = _dice_loss_ref(y_pr4, y_gt4)
    assert jnp.allclose(loss4, ref4, rtol=1e-5, atol=1e-5), (loss4, ref4)

    print("KERNEL_OK")
</pallas_src>

<mosaic_0001>
module attributes {stable_mosaic.version = 11 : i64} {
  func.func @_dice_sums_kernel(%arg0: i32, %arg1: i32, %arg2: memref<16x128xf32, #tpu.memory_space<vmem>>, %arg3: memref<16x128xf32, #tpu.memory_space<vmem>>, %arg4: memref<1x2x8x128xf32, #tpu.memory_space<vmem>>) attributes {dimension_semantics = [#tpu.dimension_semantics<parallel>, #tpu.dimension_semantics<arbitrary>], iteration_bounds = array<i64: 1, 1>, scalar_prefetch = 0 : i64, scratch_operands = 0 : i64, tpu.core_type = #tpu.core_type<tc>, window_params = [{transform_indices = @transform_0, window_bounds = array<i64: 16, 128>}, {transform_indices = @transform_1, window_bounds = array<i64: 16, 128>}, {transform_indices = @transform_2, window_bounds = array<i64: 1, 2, 8, 128>}]} {
    %c0_i32 = arith.constant 0 : i32
    %0 = arith.cmpi eq, %arg1, %c0_i32 : i32
    %1 = arith.extui %0 : i1 to i32
    %c0_i32_0 = arith.constant 0 : i32
    %2 = arith.cmpi ne, %1, %c0_i32_0 : i32
    scf.if %2 {
      %cst_23 = arith.constant 0.000000e+00 : f32
      %30 = vector.broadcast %cst_23 : f32 to vector<1x2x8x128xf32>
      %c0_24 = arith.constant 0 : index
      %c0_25 = arith.constant 0 : index
      %c0_26 = arith.constant 0 : index
      %c0_27 = arith.constant 0 : index
      %31 = vector.load %arg4[%c0_24, %c0_25, %c0_26, %c0_27] : memref<1x2x8x128xf32, #tpu.memory_space<vmem>>, vector<1x2x8x128xf32>
      tpu.vector_store %arg4[%c0_24, %c0_25, %c0_26, %c0_27], %30 {strides = array<i32>} : memref<1x2x8x128xf32, #tpu.memory_space<vmem>>, vector<1x2x8x128xf32>,
    } else {
    }
    %c0 = arith.constant 0 : index
    %c0_1 = arith.constant 0 : index
    %3 = vector.load %arg2[%c0, %c0_1] : memref<16x128xf32, #tpu.memory_space<vmem>>, vector<16x128xf32>
    %c0_2 = arith.constant 0 : index
    %c0_3 = arith.constant 0 : index
    %4 = vector.load %arg3[%c0_2, %c0_3] : memref<16x128xf32, #tpu.memory_space<vmem>>, vector<16x128xf32>
    %cst = arith.constant 5.000000e-01 : f32
    %5 = vector.broadcast %cst : f32 to vector<16x128xf32>
    %6 = arith.mulf %5, %3 : vector<16x128xf32>
    %7 = math.tanh %6 : vector<16x128xf32>
    %cst_4 = arith.constant 5.000000e-01 : f32
    %8 = vector.broadcast %cst_4 : f32 to vector<16x128xf32>
    %9 = arith.mulf %8, %7 : vector<16x128xf32>
    %cst_5 = arith.constant 5.000000e-01 : f32
    %10 = vector.broadcast %cst_5 : f32 to vector<16x128xf32>
    %11 = arith.addf %9, %10 : vector<16x128xf32>
    %12 = arith.mulf %11, %4 : vector<16x128xf32>
    %13 = arith.addf %11, %4 : vector<16x128xf32>
    %c0_6 = arith.constant 0 : index
    %c0_7 = arith.constant 0 : index
    %c0_8 = arith.constant 0 : index
    %c0_9 = arith.constant 0 : index
    %14 = vector.load %arg4[%c0_6, %c0_7, %c0_8, %c0_9] : memref<1x2x8x128xf32, #tpu.memory_space<vmem>>, vector<1x1x8x128xf32>
    %15 = vector.shape_cast %14 : vector<1x1x8x128xf32> to vector<8x128xf32>
    %16 = vector.shape_cast %12 : vector<16x128xf32> to vector<2x8x128xf32>
    %cst_10 = arith.constant dense<0.000000e+00> : vector<8x128xf32>
    %17 = vector.multi_reduction <add>, %16, %cst_10 [0] : vector<2x8x128xf32> to vector<8x128xf32>
    %18 = arith.addf %15, %17 : vector<8x128xf32>
    %c0_11 = arith.constant 0 : index
    %c0_12 = arith.constant 0 : index
    %c0_13 = arith.constant 0 : index
    %c0_14 = arith.constant 0 : index
    %19 = vector.load %arg4[%c0_11, %c0_12, %c0_13, %c0_14] : memref<1x2x8x128xf32, #tpu.memory_space<vmem>>, vector<1x1x8x128xf32>
    %20 = vector.shape_cast %19 : vector<1x1x8x128xf32> to vector<8x128xf32>
    %21 = vector.shape_cast %18 : vector<8x128xf32> to vector<1x1x8x128xf32>
    tpu.vector_store %arg4[%c0_11, %c0_12, %c0_13, %c0_14], %21 {strides = array<i32>} : memref<1x2x8x128xf32, #tpu.memory_space<vmem>>, vector<1x1x8x128xf32>,
    %c0_15 = arith.constant 0 : index
    %c1 = arith.constant 1 : index
    %c0_16 = arith.constant 0 : index
    %c0_17 = arith.constant 0 : index
    %22 = vector.load %arg4[%c0_15, %c1, %c0_16, %c0_17] : memref<1x2x8x128xf32, #tpu.memory_space<vmem>>, vector<1x1x8x128xf32>
    %23 = vector.shape_cast %22 : vector<1x1x8x128xf32> to vector<8x128xf32>
    %24 = vector.shape_cast %13 : vector<16x128xf32> to vector<2x8x128xf32>
    %cst_18 = arith.constant dense<0.000000e+00> : vector<8x128xf32>
    %25 = vector.multi_reduction <add>, %24, %cst_18 [0] : vector<2x8x128xf32> to vector<8x128xf32>
    %26 = arith.addf %23, %25 : vector<8x128xf32>
    %c0_19 = arith.constant 0 : index
    %c1_20 = arith.constant 1 : index
    %c0_21 = arith.constant 0 : index
    %c0_22 = arith.constant 0 : index
    %27 = vector.load %arg4[%c0_19, %c1_20, %c0_21, %c0_22] : memref<1x2x8x128xf32, #tpu.memory_space<vmem>>, vector<1x1x8x128xf32>
    %28 = vector.shape_cast %27 : vector<1x1x8x128xf32> to vector<8x128xf32>
    %29 = vector.shape_cast %26 : vector<8x128xf32> to vector<1x1x8x128xf32>
    tpu.vector_store %arg4[%c0_19, %c1_20, %c0_21, %c0_22], %29 {strides = array<i32>} : memref<1x2x8x128xf32, #tpu.memory_space<vmem>>, vector<1x1x8x128xf32>,
    return
  }
  func.func @transform_0(%arg0: i32, %arg1: i32) -> (i32, i32) {
    %c1_i32 = arith.constant 1 : i32
    %0 = arith.muli %arg0, %c1_i32 : i32
    %1 = arith.addi %0, %arg1 : i32
    %c0_i32 = arith.constant 0 : i32
    %c0_i32_0 = arith.constant 0 : i32
    return %1, %c0_i32 : i32, i32
  }
  func.func @transform_1(%arg0: i32, %arg1: i32) -> (i32, i32) {
    %c1_i32 = arith.constant 1 : i32
    %0 = arith.muli %arg0, %c1_i32 : i32
    %1 = arith.addi %0, %arg1 : i32
    %c0_i32 = arith.constant 0 : i32
    %c0_i32_0 = arith.constant 0 : i32
    return %1, %c0_i32 : i32, i32
  }
  func.func @transform_2(%arg0: i32, %arg1: i32) -> (i32, i32, i32, i32) {
    %c0_i32 = arith.constant 0 : i32
    %c0_i32_0 = arith.constant 0 : i32
    %c0_i32_1 = arith.constant 0 : i32
    %c0_i32_2 = arith.constant 0 : i32
    return %arg0, %c0_i32, %c0_i32_0, %c0_i32_1 : i32, i32, i32, i32
  }
}

</mosaic_0001>

<llo_original>
// kernel: dice_loss.1
$region0: #{dice_loss.1}
  #allocation0 [shape = 'u32[]', space=smem, size = 0x4, offset = 0x4, fixed_abs, tag = 'smem constant byte address 0x4 - core index']
  #allocation1 [shape = 'u32[72,128]{1,0:T(1,128)}', space=vmem, size = 0x9000, scoped, tag = 'internal scratch']
  %s0 = inlined_call_operand.vmem [shape: f32[16,128], index: 0, kind: input, shape index: {}]
  %s1 = inlined_call_operand.vmem [shape: f32[16,128], index: 1, kind: input, shape index: {}]
  %s2 = inlined_call_operand.vmem [shape: f32[1,2,8,128], index: 2, kind: output, shape index: {}]
  %s3 = sld [smem:[#allocation0]]
  $region22: #{dice_loss.1} parent=0
    _
  %s5 = ssub.s32 1, %s3
  %s6 = scalar_select 0, %s5, %s3
  // Predicated region
  $region2: #{dice_loss.1} parent=0 // pred_check
    _
  $region3: #{dice_loss.1} parent=0 // pred_check_branch
    %8 = sbr.rel (0) target = $region5
  $region4: #{dice_loss.1} parent=0 // pred_region
    %s9 = sadd.s32 0, 0
    %s10 = smul.u32 2, %s9
    %p11 = scmp.lt.s32.totalorder %s10, 1
    %s12 = scalar_select %p11, %s10, 1
    %s13 = smul.addr %s12, 8
    %s14 = scalar_lea.vmem %s0, %s13
    %s15 = sadd.s32 0, 0
    %s16 = smul.u32 2, %s15
  $region5: #{dice_loss.1} parent=0 // pred_fallthru
    _
  // Predicated region
  $region6: #{dice_loss.1} parent=0 // pred_check
    _
  $region7: #{dice_loss.1} parent=0 // pred_check_branch
    %18 = sbr.rel (0) target = $region9
  $region8: #{dice_loss.1} parent=0 // pred_region
    %s19 = sadd.s32 0, 0
    %s20 = smul.u32 2, %s19
    %p21 = scmp.lt.s32.totalorder %s20, 1
    %s22 = scalar_select %p21, %s20, 1
    %s23 = smul.addr %s22, 8
    %s24 = scalar_lea.vmem %s1, %s23
    %s25 = sadd.s32 0, 0
    %s26 = smul.u32 2, %s25
  $region9: #{dice_loss.1} parent=0 // pred_fallthru
    _
  %s27 = sadd.s32 0, 0
  %s28 = smul.u32 2, %s27
  %p29 = scmp.lt.s32.totalorder %s28, 1
  %s30 = scalar_select %p29, %s28, 1
  %s31 = smul.addr %s30, 8
  %s32 = scalar_lea.vmem %s0, %s31
  %s33 = sadd.s32 0, 0
  %s34 = smul.u32 2, %s33
  %p35 = scmp.lt.s32.totalorder %s34, 1
  %s36 = scalar_select %p35, %s34, 1
  %s37 = smul.addr %s36, 8
  %s38 = scalar_lea.vmem %s1, %s37
  %s39 = sadd.s32 0, 0
  %s40 = smul.u32 2, %s39
  %p41 = scmp.lt.s32.totalorder %s40, 1
  %s42 = scalar_select %p41, %s40, 1
  %s43 = smul.addr %s42, 8
  %s44 = scalar_lea.vmem %s0, %s43
  %s45 = sadd.s32 0, 0
  %s46 = smul.u32 2, %s45
  %s47 = sadd.s32 0, 0
  %s48 = smul.u32 2, %s47
  %p49 = scmp.lt.s32.totalorder %s48, 1
  %s50 = scalar_select %p49, %s48, 1
  %s51 = smul.addr %s50, 8
  %s52 = scalar_lea.vmem %s1, %s51
  %s53 = sadd.s32 0, 0
  %s54 = smul.u32 2, %s53
  %p55 = scmp.eq.s32.totalorder 0, 0
  // Predicated region
  $region10: #{dice_loss.1} parent=0 // pred_check
    %p56 = pneg %p55
  $region11: #{dice_loss.1} parent=0 // pred_check_branch
    %58 = sbr.rel (%p56) target = $region13
  $region12: #{dice_loss.1} parent=0 // pred_region
    %59 = vst [vmem:[%s2] sm:$0xff] 0.0
    %60 = vst [vmem:[%s2 + $0x8] sm:$0xff] 0.0
  $region13: #{dice_loss.1} parent=0 // pred_fallthru
    _
  %v61 = vld [vmem:[%s44] sm:$0xff]
  %v62 = vld [vmem:[%s44 + $0x8] sm:$0xff]
  %v63 = vld [vmem:[%s52] sm:$0xff]
  %v64 = vld [vmem:[%s52 + $0x8] sm:$0xff]
  %v65 = vmul.f32 %v61, 0.5
  %v66 = vmul.f32 %v62, 0.5
  %v67 = vtanh.pop %v65
  %v68 = vtanh.pop %v66
  %v69 = vmul.f32 %v67, 0.5
  %v70 = vmul.f32 %v68, 0.5
  %v71 = vadd.f32 %v69, 0.5
  %v72 = vadd.f32 %v70, 0.5
  %v73 = vmul.f32 %v71, %v63
  %v74 = vmul.f32 %v72, %v64
  %v75 = vadd.f32 %v71, %v63
  %v76 = vadd.f32 %v72, %v64
  %v77 = vld [vmem:[%s2] sm:$0xff]
  %v78 = vadd.f32 %v73, %v74
  %v79 = vadd.f32 %v77, %v78
  %80 = vst [vmem:[%s2] sm:$0xff] %v79
  %s81 = scalar_lea.vmem %s2, 8
  %v82 = vld [vmem:[%s81] sm:$0xff]
  %v83 = vadd.f32 %v75, %v76
  %v84 = vadd.f32 %v82, %v83
  %85 = vst [vmem:[%s81] sm:$0xff] %v84
  // Predicated region
  $region14: #{dice_loss.1} parent=0 // pred_check
    _
  $region15: #{dice_loss.1} parent=0 // pred_check_branch
    %87 = sbr.rel (0) target = $region17
  $region16: #{dice_loss.1} parent=0 // pred_region
    _
  $region17: #{dice_loss.1} parent=0 // pred_fallthru
    _
  // Predicated region
  $region18: #{dice_loss.1} parent=0 // pred_check
    _
  $region19: #{dice_loss.1} parent=0 // pred_check_branch
    %89 = sbr.rel (0) target = $region21
  $region20: #{dice_loss.1} parent=0 // pred_region
    _
  $region21: #{dice_loss.1} parent=0 // pred_fallthru
    _

</llo_original>
